<compile_context>
chip_gen: v7x
topology: tpu7x:2x2x1
jax: 0.10.0
libtpu: 0.0.40
codegen_flags: <defaults>
</compile_context>

<pallas_src>
import functools

import jax
import jax.numpy as jnp
from jax.experimental import pallas as pl
from jax.experimental.pallas import tpu as pltpu

ALPHA1 = 0.9
ALPHA2 = 0.6
BETA = 0.1
GAMMA1 = 4 / 3
GAMMA2 = 2.5
LMBDA = 0.4

_LANES = 128
_SUB_ROWS = 64            # rows per inner streaming step (multiple of 8 & 16)
_MAX_BLOCK_ROWS = 4096    # 4096 x 128 f32 = 2 MiB per input per grid step


def _cdiv(a, b):
    return -(-a // b)


def _hybrid_sums_kernel(x_ref, t_ref, out_ref, *, block_rows, sub_rows, nb,
                        half, last_valid, has_phantom, has_ragged,
                        hard_targets):
    """Accumulate per-(sublane, lane) partial sums of [x*t, x, t, bce].

    x_ref, t_ref : (block_rows, 128) tiles (any float dtype, cast in-kernel)
    out_ref      : (1, 4, 8, 128) resident accumulator slab for this core,
                   rows = [TP, sum_x, sum_t, BCE_sum]
    """
    c = pl.program_id(0)          # core-split axis ("parallel")
    i = pl.program_id(1)          # block reduction axis ("arbitrary")

    @pl.when(i == 0)
    def _init():
        out_ref[...] = jnp.zeros_like(out_ref)

    def lane_sum(v):
        # (k*8, 128) -> (8, 128): the trailing (8, 128) matches the native f32
        # tile, so the reshape is a layout no-op and the sum is pure VPU adds.
        return jnp.sum(v.reshape(-1, 8, _LANES), axis=0)

    def accumulate(limit):
        # limit: None for a full block, else the static number of valid rows
        # in this (trailing) block.  Masked rows are zeroed BEFORE jnp.log so
        # garbage from the partial-block DMA can never poison the sums.
        if limit is None:
            n_sub = block_rows // sub_rows
            row_ids = None
        else:
            n_sub = _cdiv(limit, sub_rows)
            row_ids = jax.lax.broadcasted_iota(jnp.int32, (sub_rows, _LANES), 0)

        def body(j, carry):
            tp_a, x_a, t_a, b_a = carry
            r = pl.multiple_of(j * sub_rows, sub_rows)
            xs = x_ref[pl.ds(r, sub_rows), :].astype(jnp.float32)
            ts = t_ref[pl.ds(r, sub_rows), :].astype(jnp.float32)
            if limit is not None:
                valid = row_ids < (limit - r)        # scalar-side offset math
                xs = jnp.where(valid, xs, 0.0)
                ts = jnp.where(valid, ts, 0.0)
            if hard_targets:
                # One EUP log per element; exact only for {0, 1} targets.
                p = jnp.where(ts > 0.5, xs, 1.0 - xs)
                bce = -jnp.maximum(jnp.log(p), -100.0)
            else:
                # Same -100 log clamp as torch binary_cross_entropy; it also
                # makes zero (masked / padded) elements contribute exactly 0.
                log_x = jnp.maximum(jnp.log(xs), -100.0)
                log_1mx = jnp.maximum(jnp.log1p(-xs), -100.0)
                bce = ts * (log_1mx - log_x) - log_1mx
            return (tp_a + lane_sum(xs * ts), x_a + lane_sum(xs),
                    t_a + lane_sum(ts), b_a + lane_sum(bce))

        zero = jnp.zeros((8, _LANES), jnp.float32)
        tp_a, x_a, t_a, b_a = jax.lax.fori_loop(
            0, n_sub, body, (zero, zero, zero, zero), unroll=min(2, n_sub))
        out_ref[0, 0] += tp_a     # TP partials
        out_ref[0, 1] += x_a      # sum(x)  -> FP = sum(x) - TP
        out_ref[0, 2] += t_a      # sum(t)  -> FN = sum(t) - TP
        out_ref[0, 3] += b_a      # BCE numerator

    if not has_phantom and not has_ragged:
        accumulate(None)                       # mask-free fast path
    elif not has_phantom and nb == 1:
        accumulate(last_valid)                 # single (ragged) block
    else:
        blk = c * half + i                     # logical block index
        n_full = nb - 1 if has_ragged else nb
        if n_full > 0:
            @pl.when(blk < n_full)
            def _full():
                accumulate(None)
        if has_ragged:
            @pl.when(blk == nb - 1)
            def _trailing():
                accumulate(last_valid)
        # blk >= nb (phantom blocks of the odd core split) accumulate nothing;
        # their index_map is clamped to nb-1 so no OOB DMA is ever issued.


def hybrid_loss(inputs, targets, smooth=1.0, alpha1=ALPHA1, alpha2=ALPHA2,
                beta=BETA, gamma1=GAMMA1, gamma2=GAMMA2, lmbda=LMBDA,
                *, hard_targets=False, max_block_rows=_MAX_BLOCK_ROWS):
    # TODO(synk): accepting logits and fusing the sigmoid in-kernel would save
    # a full HBM round trip, but the reference module consumes probabilities.
    x = jnp.reshape(inputs, (-1,))
    t = jnp.reshape(targets, (-1,))
    n = x.shape[0]

    pad = (-n) % _LANES
    if pad:
        # Rare path (element count not a multiple of 128): jnp.pad is a full
        # copy, but it is the only way to get a lane-aligned (rows, 128) view.
        # Zero padding contributes exactly 0 to every accumulated sum.
        x = jnp.pad(x, (0, pad))
        t = jnp.pad(t, (0, pad))
    rows = (n + pad) // _LANES

    x2 = x.reshape(rows, _LANES)          # bitcast when pad == 0 (zero copy)
    t2 = t.reshape(rows, _LANES)

    max_block_rows = max(_SUB_ROWS, (max_block_rows // _SUB_ROWS) * _SUB_ROWS)
    block_rows = min(max_block_rows, _cdiv(rows, _SUB_ROWS) * _SUB_ROWS)
    nb = _cdiv(rows, block_rows)          # logical row blocks
    ncores = 2 if nb >= 2 else 1          # v7x 2-TC split; serial loop of 2
                                          # on single-core chips (harmless)
    half = _cdiv(nb, ncores)              # row blocks per core
    has_phantom = ncores * half != nb     # odd nb: one clamped, skipped block
    has_ragged = rows % block_rows != 0   # trailing partial block
    last_valid = rows - (nb - 1) * block_rows

    if has_phantom:
        def in_map(c, i):
            # Clamp phantom block indices in-bounds; the kernel skips their
            # accumulation by logical index, so nothing is double counted.
            return (jnp.minimum(c * half + i, nb - 1), 0)
    else:
        def in_map(c, i):
            return (c * half + i, 0)

    kernel = functools.partial(
        _hybrid_sums_kernel, block_rows=block_rows, sub_rows=_SUB_ROWS,
        nb=nb, half=half, last_valid=last_valid, has_phantom=has_phantom,
        has_ragged=has_ragged, hard_targets=hard_targets)

    sums = pl.pallas_call(
        kernel,
        out_shape=jax.ShapeDtypeStruct((ncores, 4, 8, _LANES), jnp.float32),
        grid_spec=pltpu.PrefetchScalarGridSpec(
            num_scalar_prefetch=0,
            grid=(ncores, half),
            in_specs=[
                pl.BlockSpec((block_rows, _LANES), in_map),
                pl.BlockSpec((block_rows, _LANES), in_map),
            ],
            out_specs=pl.BlockSpec((1, 4, 8, _LANES),
                                   lambda c, i: (c, 0, 0, 0)),
        ),
        compiler_params=pltpu.CompilerParams(
            dimension_semantics=("parallel", "arbitrary"),
            vmem_limit_bytes=32 * 1024 * 1024),
    )(x2, t2)

    totals = jnp.sum(sums, axis=(0, 2, 3))   # (4,) = [TP, sum_x, sum_t, BCE]
    tp, sum_x, sum_t, bce_sum = totals[0], totals[1], totals[2], totals[3]
    fp = sum_x - tp
    fn = sum_t - tp
    bce_mean = bce_sum / n

    tversky = (tp + smooth) / (tp + alpha1 * fp + beta * fn + smooth)
    focaltversky = (1.0 - tversky) ** gamma1
    bce_exp = jnp.exp(-bce_mean)
    focal_loss = alpha2 * (1.0 - bce_exp) ** gamma2 * bce_mean
    return focal_loss * lmbda + (1.0 - lmbda) * focaltversky


def _reference_hybrid_loss(inputs, targets, smooth=1.0):
    """Pure-JAX reference mirroring the PyTorch forward."""
    x = jnp.reshape(inputs, (-1,)).astype(jnp.float32)
    t = jnp.reshape(targets, (-1,)).astype(jnp.float32)
    tp = jnp.sum(x * t)
    fp = jnp.sum((1.0 - t) * x)
    fn = jnp.sum(t * (1.0 - x))
    tversky = (tp + smooth) / (tp + ALPHA1 * fp + BETA * fn + smooth)
    focaltversky = (1.0 - tversky) ** GAMMA1
    bce = jnp.mean(-(t * jnp.maximum(jnp.log(x), -100.0)
                     + (1.0 - t) * jnp.maximum(jnp.log(1.0 - x), -100.0)))
    focal = ALPHA2 * (1.0 - jnp.exp(-bce)) ** GAMMA2 * bce
    return focal * LMBDA + (1.0 - LMBDA) * focaltversky


if __name__ == "__main__":
    key = jax.random.PRNGKey(0)
    k1, k2, k3, k4, k5, k6 = jax.random.split(key, 6)

    def check(loss, ref):
        assert jnp.allclose(loss, ref, rtol=1e-5, atol=1e-5), (loss, ref)

    # HybridLoss has no learnable parameters; inputs are probabilities in
    # (0, 1) (e.g. after a sigmoid), targets are {0, 1}.

    # 1) Lane-aligned case (zero-copy reshape, single ragged block):
    #    2*4*16*16 = 2048 elements.
    shape = (2, 4, 16, 16)
    inputs = jax.random.uniform(k1, shape, jnp.float32, minval=0.01, maxval=0.99)
    targets = jax.random.bernoulli(k2, 0.5, shape).astype(jnp.float32)
    loss = jax.block_until_ready(hybrid_loss(inputs, targets))
    check(loss, _reference_hybrid_loss(inputs, targets))

    # 2) Unaligned case (n % 128 != 0 -> pad fallback): 2*3*10*10 = 600 elems.
    shape2 = (2, 3, 10, 10)
    inputs2 = jax.random.uniform(k3, shape2, jnp.float32, minval=0.01, maxval=0.99)
    targets2 = jax.random.bernoulli(k4, 0.5, shape2).astype(jnp.float32)
    loss2 = jax.block_until_ready(hybrid_loss(inputs2, targets2))
    check(loss2, _reference_hybrid_loss(inputs2, targets2))

    # 3) Multi-block + 2-way core split + odd block count (phantom block) +
    #    ragged trailing block, exercised via a small max_block_rows override:
    #    2*9*32*32 = 18432 elements -> 144 rows -> 3 logical blocks of 64 rows.
    shape3 = (2, 9, 32, 32)
    inputs3 = jax.random.uniform(k5, shape3, jnp.float32, minval=0.01, maxval=0.99)
    targets3 = jax.random.bernoulli(k6, 0.5, shape3).astype(jnp.float32)
    loss3 = jax.block_until_ready(hybrid_loss(inputs3, targets3,
                                              max_block_rows=64))
    check(loss3, _reference_hybrid_loss(inputs3, targets3))

    # 4) bf16 inputs/targets stream straight through (f32 cast is in-kernel).
    loss4 = jax.block_until_ready(
        hybrid_loss(inputs.astype(jnp.bfloat16), targets.astype(jnp.bfloat16)))
    ref4 = _reference_hybrid_loss(inputs.astype(jnp.bfloat16),
                                  targets.astype(jnp.bfloat16))
    check(loss4, ref4)

    # 5) Optional single-log BCE for hard {0, 1} labels (v7x EUP relief).
    loss5 = jax.block_until_ready(hybrid_loss(inputs, targets,
                                              hard_targets=True))
    check(loss5, _reference_hybrid_loss(inputs, targets))

    print("KERNEL_OK")
</pallas_src>

<mosaic_0001>
module attributes {stable_mosaic.version = 11 : i64} {
  func.func @_hybrid_sums_kernel(%arg0: i32, %arg1: i32, %arg2: memref<64x128xf32, #tpu.memory_space<vmem>>, %arg3: memref<64x128xf32, #tpu.memory_space<vmem>>, %arg4: memref<1x4x8x128xf32, #tpu.memory_space<vmem>>) attributes {dimension_semantics = [#tpu.dimension_semantics<parallel>, #tpu.dimension_semantics<arbitrary>], iteration_bounds = array<i64: 1, 1>, scalar_prefetch = 0 : i64, scratch_operands = 0 : i64, tpu.core_type = #tpu.core_type<tc>, window_params = [{transform_indices = @transform_0, window_bounds = array<i64: 64, 128>}, {transform_indices = @transform_1, window_bounds = array<i64: 64, 128>}, {transform_indices = @transform_2, window_bounds = array<i64: 1, 4, 8, 128>}]} {
    %c0_i32 = arith.constant 0 : i32
    %0 = arith.cmpi eq, %arg1, %c0_i32 : i32
    %1 = arith.extui %0 : i1 to i32
    %c0_i32_0 = arith.constant 0 : i32
    %2 = arith.cmpi ne, %1, %c0_i32_0 : i32
    scf.if %2 {
      %cst_41 = arith.constant 0.000000e+00 : f32
      %66 = vector.broadcast %cst_41 : f32 to vector<1x4x8x128xf32>
      %c0_42 = arith.constant 0 : index
      %c0_43 = arith.constant 0 : index
      %c0_44 = arith.constant 0 : index
      %c0_45 = arith.constant 0 : index
      %67 = vector.load %arg4[%c0_42, %c0_43, %c0_44, %c0_45] : memref<1x4x8x128xf32, #tpu.memory_space<vmem>>, vector<1x4x8x128xf32>
      tpu.vector_store %arg4[%c0_42, %c0_43, %c0_44, %c0_45], %66 {strides = array<i32>} : memref<1x4x8x128xf32, #tpu.memory_space<vmem>>, vector<1x4x8x128xf32>,
    } else {
    }
    %3 = tpu.iota {dimensions = array<i32: 0>} : vector<64x128xi32>
    %cst = arith.constant 0.000000e+00 : f32
    %4 = vector.broadcast %cst : f32 to vector<8x128xf32>
    %c0_i32_1 = arith.constant 0 : i32
    %c64_i32 = arith.constant 64 : i32
    %5 = arith.muli %c0_i32_1, %c64_i32 : i32
    %6 = tpu.assume_multiple %5, 64 : i32
    %7 = arith.index_cast %6 : i32 to index
    %c0 = arith.constant 0 : index
    %8 = vector.load %arg2[%7, %c0] : memref<64x128xf32, #tpu.memory_space<vmem>>, vector<64x128xf32>
    %9 = arith.index_cast %6 : i32 to index
    %c0_2 = arith.constant 0 : index
    %10 = vector.load %arg3[%9, %c0_2] : memref<64x128xf32, #tpu.memory_space<vmem>>, vector<64x128xf32>
    %c16_i32 = arith.constant 16 : i32
    %11 = arith.subi %c16_i32, %6 : i32
    %12 = vector.broadcast %11 : i32 to vector<64x128xi32>
    %13 = arith.cmpi slt, %3, %12 : vector<64x128xi32>
    %cst_3 = arith.constant 0.000000e+00 : f32
    %14 = vector.broadcast %cst_3 : f32 to vector<64x128xf32>
    %15 = arith.select %13, %8, %14 : vector<64x128xi1>, vector<64x128xf32>
    %cst_4 = arith.constant 0.000000e+00 : f32
    %16 = vector.broadcast %cst_4 : f32 to vector<64x128xf32>
    %17 = arith.select %13, %10, %16 : vector<64x128xi1>, vector<64x128xf32>
    %18 = math.log %15 : vector<64x128xf32>
    %cst_5 = arith.constant -1.000000e+02 : f32
    %19 = vector.broadcast %cst_5 : f32 to vector<64x128xf32>
    %20 = arith.maximumf %18, %19 : vector<64x128xf32>
    %cst_6 = arith.constant 0.000000e+00 : f32
    %21 = vector.broadcast %cst_6 : f32 to vector<64x128xf32>
    %22 = arith.subf %21, %15 : vector<64x128xf32>
    %23 = math.log1p %22 : vector<64x128xf32>
    %cst_7 = arith.constant -1.000000e+02 : f32
    %24 = vector.broadcast %cst_7 : f32 to vector<64x128xf32>
    %25 = arith.maximumf %23, %24 : vector<64x128xf32>
    %26 = arith.subf %25, %20 : vector<64x128xf32>
    %27 = arith.mulf %17, %26 : vector<64x128xf32>
    %28 = arith.subf %27, %25 : vector<64x128xf32>
    %29 = arith.mulf %15, %17 : vector<64x128xf32>
    %30 = vector.shape_cast %29 : vector<64x128xf32> to vector<8x8x128xf32>
    %cst_8 = arith.constant dense<0.000000e+00> : vector<8x128xf32>
    %31 = vector.multi_reduction <add>, %30, %cst_8 [0] : vector<8x8x128xf32> to vector<8x128xf32>
    %32 = arith.addf %4, %31 : vector<8x128xf32>
    %33 = vector.shape_cast %15 : vector<64x128xf32> to vector<8x8x128xf32>
    %cst_9 = arith.constant dense<0.000000e+00> : vector<8x128xf32>
    %34 = vector.multi_reduction <add>, %33, %cst_9 [0] : vector<8x8x128xf32> to vector<8x128xf32>
    %35 = arith.addf %4, %34 : vector<8x128xf32>
    %36 = vector.shape_cast %17 : vector<64x128xf32> to vector<8x8x128xf32>
    %cst_10 = arith.constant dense<0.000000e+00> : vector<8x128xf32>
    %37 = vector.multi_reduction <add>, %36, %cst_10 [0] : vector<8x8x128xf32> to vector<8x128xf32>
    %38 = arith.addf %4, %37 : vector<8x128xf32>
    %39 = vector.shape_cast %28 : vector<64x128xf32> to vector<8x8x128xf32>
    %cst_11 = arith.constant dense<0.000000e+00> : vector<8x128xf32>
    %40 = vector.multi_reduction <add>, %39, %cst_11 [0] : vector<8x8x128xf32> to vector<8x128xf32>
    %41 = arith.addf %4, %40 : vector<8x128xf32>
    %c1_i32 = arith.constant 1 : i32
    %c0_12 = arith.constant 0 : index
    %c0_13 = arith.constant 0 : index
    %c0_14 = arith.constant 0 : index
    %c0_15 = arith.constant 0 : index
    %42 = vector.load %arg4[%c0_12, %c0_13, %c0_14, %c0_15] : memref<1x4x8x128xf32, #tpu.memory_space<vmem>>, vector<1x1x8x128xf32>
    %43 = vector.shape_cast %42 : vector<1x1x8x128xf32> to vector<8x128xf32>
    %44 = arith.addf %43, %32 : vector<8x128xf32>
    %c0_16 = arith.constant 0 : index
    %c0_17 = arith.constant 0 : index
    %c0_18 = arith.constant 0 : index
    %c0_19 = arith.constant 0 : index
    %45 = vector.load %arg4[%c0_16, %c0_17, %c0_18, %c0_19] : memref<1x4x8x128xf32, #tpu.memory_space<vmem>>, vector<1x1x8x128xf32>
    %46 = vector.shape_cast %45 : vector<1x1x8x128xf32> to vector<8x128xf32>
    %47 = vector.shape_cast %44 : vector<8x128xf32> to vector<1x1x8x128xf32>
    tpu.vector_store %arg4[%c0_16, %c0_17, %c0_18, %c0_19], %47 {strides = array<i32>} : memref<1x4x8x128xf32, #tpu.memory_space<vmem>>, vector<1x1x8x128xf32>,
    %c0_20 = arith.constant 0 : index
    %c1 = arith.constant 1 : index
    %c0_21 = arith.constant 0 : index
    %c0_22 = arith.constant 0 : index
    %48 = vector.load %arg4[%c0_20, %c1, %c0_21, %c0_22] : memref<1x4x8x128xf32, #tpu.memory_space<vmem>>, vector<1x1x8x128xf32>
    %49 = vector.shape_cast %48 : vector<1x1x8x128xf32> to vector<8x128xf32>
    %50 = arith.addf %49, %35 : vector<8x128xf32>
    %c0_23 = arith.constant 0 : index
    %c1_24 = arith.constant 1 : index
    %c0_25 = arith.constant 0 : index
    %c0_26 = arith.constant 0 : index
    %51 = vector.load %arg4[%c0_23, %c1_24, %c0_25, %c0_26] : memref<1x4x8x128xf32, #tpu.memory_space<vmem>>, vector<1x1x8x128xf32>
    %52 = vector.shape_cast %51 : vector<1x1x8x128xf32> to vector<8x128xf32>
    %53 = vector.shape_cast %50 : vector<8x128xf32> to vector<1x1x8x128xf32>
    tpu.vector_store %arg4[%c0_23, %c1_24, %c0_25, %c0_26], %53 {strides = array<i32>} : memref<1x4x8x128xf32, #tpu.memory_space<vmem>>, vector<1x1x8x128xf32>,
    %c0_27 = arith.constant 0 : index
    %c2 = arith.constant 2 : index
    %c0_28 = arith.constant 0 : index
    %c0_29 = arith.constant 0 : index
    %54 = vector.load %arg4[%c0_27, %c2, %c0_28, %c0_29] : memref<1x4x8x128xf32, #tpu.memory_space<vmem>>, vector<1x1x8x128xf32>
    %55 = vector.shape_cast %54 : vector<1x1x8x128xf32> to vector<8x128xf32>
    %56 = arith.addf %55, %38 : vector<8x128xf32>
    %c0_30 = arith.constant 0 : index
    %c2_31 = arith.constant 2 : index
    %c0_32 = arith.constant 0 : index
    %c0_33 = arith.constant 0 : index
    %57 = vector.load %arg4[%c0_30, %c2_31, %c0_32, %c0_33] : memref<1x4x8x128xf32, #tpu.memory_space<vmem>>, vector<1x1x8x128xf32>
    %58 = vector.shape_cast %57 : vector<1x1x8x128xf32> to vector<8x128xf32>
    %59 = vector.shape_cast %56 : vector<8x128xf32> to vector<1x1x8x128xf32>
    tpu.vector_store %arg4[%c0_30, %c2_31, %c0_32, %c0_33], %59 {strides = array<i32>} : memref<1x4x8x128xf32, #tpu.memory_space<vmem>>, vector<1x1x8x128xf32>,
    %c0_34 = arith.constant 0 : index
    %c3 = arith.constant 3 : index
    %c0_35 = arith.constant 0 : index
    %c0_36 = arith.constant 0 : index
    %60 = vector.load %arg4[%c0_34, %c3, %c0_35, %c0_36] : memref<1x4x8x128xf32, #tpu.memory_space<vmem>>, vector<1x1x8x128xf32>
    %61 = vector.shape_cast %60 : vector<1x1x8x128xf32> to vector<8x128xf32>
    %62 = arith.addf %61, %41 : vector<8x128xf32>
    %c0_37 = arith.constant 0 : index
    %c3_38 = arith.constant 3 : index
    %c0_39 = arith.constant 0 : index
    %c0_40 = arith.constant 0 : index
    %63 = vector.load %arg4[%c0_37, %c3_38, %c0_39, %c0_40] : memref<1x4x8x128xf32, #tpu.memory_space<vmem>>, vector<1x1x8x128xf32>
    %64 = vector.shape_cast %63 : vector<1x1x8x128xf32> to vector<8x128xf32>
    %65 = vector.shape_cast %62 : vector<8x128xf32> to vector<1x1x8x128xf32>
    tpu.vector_store %arg4[%c0_37, %c3_38, %c0_39, %c0_40], %65 {strides = array<i32>} : memref<1x4x8x128xf32, #tpu.memory_space<vmem>>, vector<1x1x8x128xf32>,
    return
  }
  func.func @transform_0(%arg0: i32, %arg1: i32) -> (i32, i32) {
    %c1_i32 = arith.constant 1 : i32
    %0 = arith.muli %arg0, %c1_i32 : i32
    %1 = arith.addi %0, %arg1 : i32
    %c0_i32 = arith.constant 0 : i32
    %c0_i32_0 = arith.constant 0 : i32
    return %1, %c0_i32 : i32, i32
  }
  func.func @transform_1(%arg0: i32, %arg1: i32) -> (i32, i32) {
    %c1_i32 = arith.constant 1 : i32
    %0 = arith.muli %arg0, %c1_i32 : i32
    %1 = arith.addi %0, %arg1 : i32
    %c0_i32 = arith.constant 0 : i32
    %c0_i32_0 = arith.constant 0 : i32
    return %1, %c0_i32 : i32, i32
  }
  func.func @transform_2(%arg0: i32, %arg1: i32) -> (i32, i32, i32, i32) {
    %c0_i32 = arith.constant 0 : i32
    %c0_i32_0 = arith.constant 0 : i32
    %c0_i32_1 = arith.constant 0 : i32
    %c0_i32_2 = arith.constant 0 : i32
    return %arg0, %c0_i32, %c0_i32_0, %c0_i32_1 : i32, i32, i32, i32
  }
}

</mosaic_0001>

<llo_original>
// kernel: tpu_custom_call.1
$region0: #{tpu_custom_call.1}
  #allocation0 [shape = 'u32[]', space=smem, size = 0x4, offset = 0x4, fixed_abs, tag = 'smem constant byte address 0x4 - core index']
  #allocation1 [shape = 'u32[144,128]{1,0:T(1,128)}', space=vmem, size = 0x12000, scoped, tag = 'internal scratch']
  %s0 = inlined_call_operand.hbm [shape: f32[16,128], index: 0, kind: input, shape index: {}]
  %s1 = inlined_call_operand.hbm [shape: f32[16,128], index: 1, kind: input, shape index: {}]
  %s2 = inlined_call_operand.hbm [shape: f32[1,4,8,128], index: 2, kind: output, shape index: {}]
  %s3 = sld [smem:[#allocation0]]
  $region30: #{tpu_custom_call.1} parent=0
    _
  %s5 = ssub.s32 1, %s3
  %s6 = scalar_select 0, %s5, %s3
  $region1: #{tpu_custom_call.1} parent=0
    #allocation2 [shape = 'u8[32768]{0}', space=vmem, size = 0x8000, scoped, tag = 'input window, operand 0, single buffered']
    #allocation3 [shape = 's32[1]{0}', space=sflag, size = 0x4, scoped, tag = 'scoped memory for tpu_custom_call.1']
    #allocation4 [shape = 's32[1]{0}', space=sflag, size = 0x4, scoped, tag = 'scoped memory for tpu_custom_call.1']
    #allocation5 [shape = 'u8[32768]{0}', space=vmem, size = 0x8000, scoped, tag = 'input window, operand 1, single buffered']
    #allocation6 [shape = 's32[1]{0}', space=sflag, size = 0x4, scoped, tag = 'scoped memory for tpu_custom_call.1']
    #allocation7 [shape = 'u8[16384]{0}', space=vmem, size = 0x4000, scoped, tag = 'output window, operand 0, single buffered']
    %7 = vsyncpa [#allocation3], 0
    %8 = vsyncpa [#allocation6], 0
    %9 = vsyncpa [#allocation4], 0
    // Predicated region
    $region2: #{tpu_custom_call.1} parent=1 // pred_check
      _
    $region3: #{tpu_custom_call.1} parent=1 // pred_check_branch
      %11 = sbr.rel (0) target = $region5
    $region4: #{tpu_custom_call.1} parent=1 // pred_region
      %s12 = sadd.s32 0, 0
      %s13 = smul.u32 8, %s12
      %s14 = ssub.s32 2, %s13
      %s15 = smul.u32 128, %s14
      %s17 = ssub.s32 1024, %s15
      %18 = vsyncadd [#allocation3], %s17
      %p19 = scmp.ne.s32.totalorder 0, %s15
      %s20 = smul.addr %s13, 128
      %s21 = scalar_lea.hbm %s0, %s20
      %s22 = smul.u32 8, %s14
      %s23 = sshll.u32 [#allocation2], 4
      %s24 = int_to_ptr.vmem [resolvable:$true] %s23
      %s25 = sshll.u32 %s22, 4
      %29 = dma.hbm_to_vmem [thread:$0]  (%p19), %s21, %s25, %s24, [#allocation3], 128, 128, 8
    $region5: #{tpu_custom_call.1} parent=1 // pred_fallthru
      _
    // Predicated region
    $region6: #{tpu_custom_call.1} parent=1 // pred_check
      _
    $region7: #{tpu_custom_call.1} parent=1 // pred_check_branch
      %31 = sbr.rel (0) target = $region9
    $region8: #{tpu_custom_call.1} parent=1 // pred_region
      %s32 = sadd.s32 0, 0
      %s33 = smul.u32 8, %s32
      %s34 = ssub.s32 2, %s33
      %s35 = smul.u32 128, %s34
      %s37 = ssub.s32 1024, %s35
      %38 = vsyncadd [#allocation6], %s37
      %p39 = scmp.ne.s32.totalorder 0, %s35
      %s40 = smul.addr %s33, 128
      %s41 = scalar_lea.hbm %s1, %s40
      %s42 = smul.u32 8, %s34
      %s43 = sshll.u32 [#allocation5], 4
      %s44 = int_to_ptr.vmem [resolvable:$true] %s43
      %s45 = sshll.u32 %s42, 4
      %49 = dma.hbm_to_vmem [thread:$0]  (%p39), %s41, %s45, %s44, [#allocation6], 128, 128, 8
    $region9: #{tpu_custom_call.1} parent=1 // pred_fallthru
      _
    // Predicated region
    $region10: #{tpu_custom_call.1} parent=1 // pred_check
      _
    $region11: #{tpu_custom_call.1} parent=1 // pred_check_branch
      %51 = sbr.rel (0) target = $region13
    $region12: #{tpu_custom_call.1} parent=1 // pred_region
      %52 = dma.done [#allocation3], 1024
    $region13: #{tpu_custom_call.1} parent=1 // pred_fallthru
      _
    // Predicated region
    $region14: #{tpu_custom_call.1} parent=1 // pred_check
      _
    $region15: #{tpu_custom_call.1} parent=1 // pred_check_branch
      %54 = sbr.rel (0) target = $region17
    $region16: #{tpu_custom_call.1} parent=1 // pred_region
      %55 = dma.done [#allocation6], 1024
    $region17: #{tpu_custom_call.1} parent=1 // pred_fallthru
      _
    %s56 = sadd.s32 0, 0
    %s57 = smul.u32 8, %s56
    %s58 = ssub.s32 2, %s57
    %s59 = smul.u32 128, %s58
    %s60 = sadd.s32 0, 0
    %s61 = smul.u32 8, %s60
    %s62 = ssub.s32 2, %s61
    %s63 = smul.u32 128, %s62
    %p64 = scmp.eq.s32.totalorder 0, 0
    // Predicated region
    $region18: #{tpu_custom_call.1} parent=1 // pred_check
      %p65 = pneg %p64
    $region19: #{tpu_custom_call.1} parent=1 // pred_check_branch
      %67 = sbr.rel (%p65) target = $region21
    $region20: #{tpu_custom_call.1} parent=1 // pred_region
      %68 = vst [vmem:[#allocation7] sm:$0xff] 0.0
      %69 = vst [vmem:[#allocation7 + $0x8] sm:$0xff] 0.0
      %70 = vst [vmem:[#allocation7 + $0x10] sm:$0xff] 0.0
      %71 = vst [vmem:[#allocation7 + $0x18] sm:$0xff] 0.0
    $region21: #{tpu_custom_call.1} parent=1 // pred_fallthru
      _
    %v72 = vlaneseq
    %v73 = vshrl.u32 %v72, 7
    %v74 = vadd.s32 %v73, 8
    %v75 = vadd.s32 %v73, 16
    %v76 = vadd.s32 %v73, 24
    %v77 = vadd.s32 %v73, 32
    %v78 = vadd.s32 %v73, 40
    %v79 = vadd.s32 %v73, 48
    %v80 = vadd.s32 %v73, 56
    %v81 = vld [vmem:[#allocation2] sm:$0xff]
    %v82 = vld [vmem:[#allocation2 + $0x8] sm:$0xff]
    %v83 = vld [vmem:[#allocation2 + $0x10] sm:$0xff]
    %v84 = vld [vmem:[#allocation2 + $0x18] sm:$0xff]
    %v85 = vld [vmem:[#allocation2 + $0x20] sm:$0xff]
    %v86 = vld [vmem:[#allocation2 + $0x28] sm:$0xff]
    %v87 = vld [vmem:[#allocation2 + $0x30] sm:$0xff]
    %v88 = vld [vmem:[#allocation2 + $0x38] sm:$0xff]
    %v89 = vld [vmem:[#allocation5] sm:$0xff]
    %v90 = vld [vmem:[#allocation5 + $0x8] sm:$0xff]
    %v91 = vld [vmem:[#allocation5 + $0x10] sm:$0xff]
    %v92 = vld [vmem:[#allocation5 + $0x18] sm:$0xff]
    %v93 = vld [vmem:[#allocation5 + $0x20] sm:$0xff]
    %v94 = vld [vmem:[#allocation5 + $0x28] sm:$0xff]
    %v95 = vld [vmem:[#allocation5 + $0x30] sm:$0xff]
    %v96 = vld [vmem:[#allocation5 + $0x38] sm:$0xff]
    %s97 = ssub.s32 16, 0
    %v98 = vstv %s97
    %vm99 = vcmp.lt.s32.totalorder %v73, %v98
    %vm100 = vcmp.lt.s32.totalorder %v74, %v98
    %vm101 = vcmp.lt.s32.totalorder %v75, %v98
    %vm102 = vcmp.lt.s32.totalorder %v76, %v98
    %vm103 = vcmp.lt.s32.totalorder %v77, %v98
    %vm104 = vcmp.lt.s32.totalorder %v78, %v98
    %vm105 = vcmp.lt.s32.totalorder %v79, %v98
    %vm106 = vcmp.lt.s32.totalorder %v80, %v98
    %v107 = vsel %vm99, %v81, 0.0
    %v108 = vsel %vm100, %v82, 0.0
    %v109 = vsel %vm101, %v83, 0.0
    %v110 = vsel %vm102, %v84, 0.0
    %v111 = vsel %vm103, %v85, 0.0
    %v112 = vsel %vm104, %v86, 0.0
    %v113 = vsel %vm105, %v87, 0.0
    %v114 = vsel %vm106, %v88, 0.0
    %v115 = vsel %vm99, %v89, 0.0
    %v116 = vsel %vm100, %v90, 0.0
    %v117 = vsel %vm101, %v91, 0.0
    %v118 = vsel %vm102, %v92, 0.0
    %v119 = vsel %vm103, %v93, 0.0
    %v120 = vsel %vm104, %v94, 0.0
    %v121 = vsel %vm105, %v95, 0.0
    %v122 = vsel %vm106, %v96, 0.0
    %v123 = vlog2.pop %v107
    %v124 = vmul.f32 %v123, 0.6931472
    %v125 = vlog2.pop %v108
    %v126 = vmul.f32 %v125, 0.6931472
    %v127 = vlog2.pop %v109
    %v128 = vmul.f32 %v127, 0.6931472
    %v129 = vlog2.pop %v110
    %v130 = vmul.f32 %v129, 0.6931472
    %v131 = vlog2.pop %v111
    %v132 = vmul.f32 %v131, 0.6931472
    %v133 = vlog2.pop %v112
    %v134 = vmul.f32 %v133, 0.6931472
    %v135 = vlog2.pop %v113
    %v136 = vmul.f32 %v135, 0.6931472
    %v137 = vlog2.pop %v114
    %v138 = vmul.f32 %v137, 0.6931472
    %v139 = vmax.f32 %v124, -100.0
    %v140 = vmax.f32 %v126, -100.0
    %v141 = vmax.f32 %v128, -100.0
    %v142 = vmax.f32 %v130, -100.0
    %v143 = vmax.f32 %v132, -100.0
    %v144 = vmax.f32 %v134, -100.0
    %v145 = vmax.f32 %v136, -100.0
    %v146 = vmax.f32 %v138, -100.0
    %v147 = vsub.f32 0.0, %v107
    %v148 = vsub.f32 0.0, %v108
    %v149 = vsub.f32 0.0, %v109
    %v150 = vsub.f32 0.0, %v110
    %v151 = vsub.f32 0.0, %v111
    %v152 = vsub.f32 0.0, %v112
    %v153 = vsub.f32 0.0, %v113
    %v154 = vsub.f32 0.0, %v114
    %v155 = vadd.f32 %v147, 1.0
    %v156 = vlog2.pop %v155
    %v157 = vmul.f32 %v156, 0.6931472
    %v158 = vmul.f32 -0.5, %v147
    %v159 = vadd.f32 %v158, 1.0
    %v160 = vmul.f32 %v159, %v147
    %v161 = vand.u32 2147483647, %v147
    %vm162 = vcmp.lt.f32.partialorder %v161, 0.0004427343
    %v163 = vsel %vm162, %v160, %v157
    %v164 = vadd.f32 %v148, 1.0
    %v165 = vlog2.pop %v164
    %v166 = vmul.f32 %v165, 0.6931472
    %v167 = vmul.f32 -0.5, %v148
    %v168 = vadd.f32 %v167, 1.0
    %v169 = vmul.f32 %v168, %v148
    %v170 = vand.u32 2147483647, %v148
    %vm171 = vcmp.lt.f32.partialorder %v170, 0.0004427343
    %v172 = vsel %vm171, %v169, %v166
    %v173 = vadd.f32 %v149, 1.0
    %v174 = vlog2.pop %v173
    %v175 = vmul.f32 %v174, 0.6931472
    %v176 = vmul.f32 -0.5, %v149
    %v177 = vadd.f32 %v176, 1.0
    %v178 = vmul.f32 %v177, %v149
    %v179 = vand.u32 2147483647, %v149
    %vm180 = vcmp.lt.f32.partialorder %v179, 0.0004427343
    %v181 = vsel %vm180, %v178, %v175
    %v182 = vadd.f32 %v150, 1.0
    %v183 = vlog2.pop %v182
    %v184 = vmul.f32 %v183, 0.6931472
    %v185 = vmul.f32 -0.5, %v150
    %v186 = vadd.f32 %v185, 1.0
    %v187 = vmul.f32 %v186, %v150
    %v188 = vand.u32 2147483647, %v150
    %vm189 = vcmp.lt.f32.partialorder %v188, 0.0004427343
    %v190 = vsel %vm189, %v187, %v184
    %v191 = vadd.f32 %v151, 1.0
    %v192 = vlog2.pop %v191
    %v193 = vmul.f32 %v192, 0.6931472
    %v194 = vmul.f32 -0.5, %v151
    %v195 = vadd.f32 %v194, 1.0
    %v196 = vmul.f32 %v195, %v151
    %v197 = vand.u32 2147483647, %v151
    %vm198 = vcmp.lt.f32.partialorder %v197, 0.0004427343
    %v199 = vsel %vm198, %v196, %v193
    %v200 = vadd.f32 %v152, 1.0
    %v201 = vlog2.pop %v200
    %v202 = vmul.f32 %v201, 0.6931472
    %v203 = vmul.f32 -0.5, %v152
    %v204 = vadd.f32 %v203, 1.0
    %v205 = vmul.f32 %v204, %v152
    %v206 = vand.u32 2147483647, %v152
    %vm207 = vcmp.lt.f32.partialorder %v206, 0.0004427343
    %v208 = vsel %vm207, %v205, %v202
    %v209 = vadd.f32 %v153, 1.0
    %v210 = vlog2.pop %v209
    %v211 = vmul.f32 %v210, 0.6931472
    %v212 = vmul.f32 -0.5, %v153
    %v213 = vadd.f32 %v212, 1.0
    %v214 = vmul.f32 %v213, %v153
    %v215 = vand.u32 2147483647, %v153
    %vm216 = vcmp.lt.f32.partialorder %v215, 0.0004427343
    %v217 = vsel %vm216, %v214, %v211
    %v218 = vadd.f32 %v154, 1.0
    %v219 = vlog2.pop %v218
    %v220 = vmul.f32 %v219, 0.6931472
    %v221 = vmul.f32 -0.5, %v154
    %v222 = vadd.f32 %v221, 1.0
    %v223 = vmul.f32 %v222, %v154
    %v224 = vand.u32 2147483647, %v154
    %vm225 = vcmp.lt.f32.partialorder %v224, 0.0004427343
    %v226 = vsel %vm225, %v223, %v220
    %v227 = vmax.f32 %v163, -100.0
    %v228 = vmax.f32 %v172, -100.0
    %v229 = vmax.f32 %v181, -100.0
    %v230 = vmax.f32 %v190, -100.0
    %v231 = vmax.f32 %v199, -100.0
    %v232 = vmax.f32 %v208, -100.0
    %v233 = vmax.f32 %v217, -100.0
    %v234 = vmax.f32 %v226, -100.0
    %v235 = vsub.f32 %v227, %v139
    %v236 = vsub.f32 %v228, %v140
    %v237 = vsub.f32 %v229, %v141
    %v238 = vsub.f32 %v230, %v142
    %v239 = vsub.f32 %v231, %v143
    %v240 = vsub.f32 %v232, %v144
    %v241 = vsub.f32 %v233, %v145
    %v242 = vsub.f32 %v234, %v146
    %v243 = vmul.f32 %v115, %v235
    %v244 = vmul.f32 %v116, %v236
    %v245 = vmul.f32 %v117, %v237
    %v246 = vmul.f32 %v118, %v238
    %v247 = vmul.f32 %v119, %v239
    %v248 = vmul.f32 %v120, %v240
    %v249 = vmul.f32 %v121, %v241
    %v250 = vmul.f32 %v122, %v242
    %v251 = vsub.f32 %v243, %v227
    %v252 = vsub.f32 %v244, %v228
    %v253 = vsub.f32 %v245, %v229
    %v254 = vsub.f32 %v246, %v230
    %v255 = vsub.f32 %v247, %v231
    %v256 = vsub.f32 %v248, %v232
    %v257 = vsub.f32 %v249, %v233
    %v258 = vsub.f32 %v250, %v234
    %v259 = vmul.f32 %v107, %v115
    %v260 = vmul.f32 %v108, %v116
    %v261 = vmul.f32 %v109, %v117
    %v262 = vmul.f32 %v110, %v118
    %v263 = vmul.f32 %v111, %v119
    %v264 = vmul.f32 %v112, %v120
    %v265 = vmul.f32 %v113, %v121
    %v266 = vmul.f32 %v114, %v122
    %v267 = vadd.f32 %v259, %v260
    %v268 = vadd.f32 %v267, %v261
    %v269 = vadd.f32 %v268, %v262
    %v270 = vadd.f32 %v269, %v263
    %v271 = vadd.f32 %v270, %v264
    %v272 = vadd.f32 %v271, %v265
    %v273 = vadd.f32 %v272, %v266
    %v274 = vadd.f32 %v273, 0.0
    %v275 = vadd.f32 %v107, %v108
    %v276 = vadd.f32 %v275, %v109
    %v277 = vadd.f32 %v276, %v110
    %v278 = vadd.f32 %v277, %v111
    %v279 = vadd.f32 %v278, %v112
    %v280 = vadd.f32 %v279, %v113
    %v281 = vadd.f32 %v280, %v114
    %v282 = vadd.f32 %v281, 0.0
    %v283 = vadd.f32 %v115, %v116
    %v284 = vadd.f32 %v283, %v117
    %v285 = vadd.f32 %v284, %v118
    %v286 = vadd.f32 %v285, %v119
    %v287 = vadd.f32 %v286, %v120
    %v288 = vadd.f32 %v287, %v121
    %v289 = vadd.f32 %v288, %v122
    %v290 = vadd.f32 %v289, 0.0
    %v291 = vadd.f32 %v251, %v252
    %v292 = vadd.f32 %v291, %v253
    %v293 = vadd.f32 %v292, %v254
    %v294 = vadd.f32 %v293, %v255
    %v295 = vadd.f32 %v294, %v256
    %v296 = vadd.f32 %v295, %v257
    %v297 = vadd.f32 %v296, %v258
    %v298 = vadd.f32 %v297, 0.0
    %v299 = vld [vmem:[#allocation7] sm:$0xff]
    %v300 = vadd.f32 %v299, %v274
    %301 = vst [vmem:[#allocation7] sm:$0xff] %v300
    %s302 = scalar_lea.vmem [#allocation7], 8
    %v303 = vld [vmem:[%s302] sm:$0xff]
    %v304 = vadd.f32 %v303, %v282
    %305 = vst [vmem:[%s302] sm:$0xff] %v304
    %s306 = scalar_lea.vmem [#allocation7], 16
    %v307 = vld [vmem:[%s306] sm:$0xff]
    %v308 = vadd.f32 %v307, %v290
    %309 = vst [vmem:[%s306] sm:$0xff] %v308
    %s310 = scalar_lea.vmem [#allocation7], 24
    %v311 = vld [vmem:[%s310] sm:$0xff]
    %v312 = vadd.f32 %v311, %v298
    %313 = vst [vmem:[%s310] sm:$0xff] %v312
    // Predicated region
    $region22: #{tpu_custom_call.1} parent=1 // pred_check
      _
    $region23: #{tpu_custom_call.1} parent=1 // pred_check_branch
      %315 = sbr.rel (0) target = $region25
    $region24: #{tpu_custom_call.1} parent=1 // pred_region
      %s317 = ssub.s32 512, 512
      %318 = vsyncadd [#allocation4], %s317
      %s319 = sshll.u32 [#allocation7], 4
      %s320 = int_to_ptr.vmem [resolvable:$true] %s319
      %325 = dma.vmem_to_hbm [thread:$0]  %s320, 512, %s2, [#allocation4], 128, 128, 8
    $region25: #{tpu_custom_call.1} parent=1 // pred_fallthru
      _
    // Predicated region
    $region26: #{tpu_custom_call.1} parent=1 // pred_check
      _
    $region27: #{tpu_custom_call.1} parent=1 // pred_check_branch
      %327 = sbr.rel (0) target = $region29
    $region28: #{tpu_custom_call.1} parent=1 // pred_region
      %328 = dma.done [#allocation4], 512
    $region29: #{tpu_custom_call.1} parent=1 // pred_fallthru
      _
    %329 = vsyncpa [#allocation3], 1
    %330 = vsyncpa [#allocation6], 1
    %331 = vsyncpa [#allocation4], 1

</llo_original>
